<compile_context>
chip_gen: v5e
topology: v5e:2x2
jax: 0.10.0
libtpu: 0.0.40
codegen_flags: <defaults>
</compile_context>

<pallas_src>
import functools

import jax
import jax.numpy as jnp
from jax import lax
from jax.experimental import pallas as pl
from jax.experimental.pallas import tpu as pltpu


def _adain_kernel(x_ref, g_ref, b_ref, o_ref, *, eps, row_tile, hw):
    """One grid step normalizes `row_tile` instance-channels.

    x_ref : (row_tile, HW) tile of the (N*C, H*W) array.
    g_ref, b_ref : FULL (N*C, 1) style params, resident in VMEM (constant
        index_map -> DMA'd once), sliced per step below.
    """
    i = pl.program_id(0)
    row0 = pl.multiple_of(i * row_tile, row_tile)
    g = g_ref[pl.ds(row0, row_tile), :]                  # (row_tile, 1) f32
    b = b_ref[pl.ds(row0, row_tile), :]

    x = x_ref[...].astype(jnp.float32)                   # (row_tile, HW)

    # Single-pass statistics: avoids materializing the centered (x - mean)
    # temporary and lets the whole transform collapse to one mul + one add
    # per element. f32 accumulation keeps precision acceptable for AdaIN.
    inv_hw = jnp.float32(1.0 / hw)
    s1 = jnp.sum(x, axis=-1, keepdims=True)
    s2 = jnp.sum(x * x, axis=-1, keepdims=True)
    mean = s1 * inv_hw
    var = jnp.maximum(s2 * inv_hw - mean * mean, 0.0)    # biased variance
    scale = lax.rsqrt(var + eps) * g
    shift = b - mean * scale
    o_ref[...] = (x * scale + shift).astype(o_ref.dtype)


def _vmem_budget_bytes():
    """Budget for pipelined x/out buffers, derived from physical VMEM."""
    cap = 64 * 1024 * 1024  # assume the smallest generation (v7x per-TC)
    try:
        cap = int(pltpu.get_tpu_info().vmem_capacity_bytes)
    except Exception:
        pass
    # ~40% of physical VMEM for the double-buffered tiles, capped at 48 MiB,
    # leaving headroom for compiler temps / layout padding.
    return max(8 << 20, min(int(cap * 0.4), 48 << 20))


def _pick_row_tile(nc, hw, dtype, vmem_budget_bytes, min_grid_steps=8):
    """Largest legal row tile that fits the VMEM budget.

    Keeps >= min_grid_steps grid steps when nc allows (megacore sharding on
    v7x + pipeline ramp), and respects sublane packing for narrow dtypes.
    """
    itemsize = jnp.dtype(dtype).itemsize
    # Sublane alignment: 8 f32 rows per vreg; bf16 packs 16, int8/fp8 pack 32.
    align = max(8, 32 // itemsize)
    # Double-buffered x input + double-buffered output + ~1 f32 temp per elem.
    per_row_bytes = 4 * hw * itemsize + hw * 4
    cap = max(1, vmem_budget_bytes // per_row_bytes)

    cands = [t for t in range(align, nc + 1, align) if nc % t == 0 and t <= cap]
    if nc <= cap and nc not in cands:
        cands.append(nc)  # full-extent block is always layout-legal
    if not cands:
        # TODO(synk): add a column (HW)-tiled two-pass / accumulator variant
        # for very large spatial sizes where one full row exceeds VMEM.
        raise NotImplementedError(
            "H*W too large for a full-row block; column tiling not implemented")
    good = [t for t in cands if nc // t >= min_grid_steps]
    return max(good) if good else max(cands)


def adain2d(x, weight, bias, *, eps=1e-5, row_tile=None):
    """AdaIN2d forward. x: (N, C, H, W); weight, bias: (N*C,) style params."""
    N, C, H, W = x.shape
    NC, HW = N * C, H * W

    budget = _vmem_budget_bytes()
    if row_tile is None:
        row_tile = _pick_row_tile(NC, HW, x.dtype, budget)
    assert NC % row_tile == 0, "N*C must be divisible by row_tile"

    x2 = x.reshape(NC, HW)
    # Keep style params in f32 (tiny arrays): avoids quantizing them when x is
    # bf16 and removes per-row casts in the kernel.
    g2 = weight.reshape(NC, 1).astype(jnp.float32)
    b2 = bias.reshape(NC, 1).astype(jnp.float32)

    grid = (NC // row_tile,)
    kernel = functools.partial(_adain_kernel, eps=eps, row_tile=row_tile, hw=HW)
    # Raise the scoped VMEM limit so the large double-buffered blocks compile
    # on every generation (16/32/32 MiB defaults are too small), while staying
    # well under v7x's 64 MiB physical VMEM.
    vmem_limit = int(min(budget + (16 << 20), 56 << 20))

    out = pl.pallas_call(
        kernel,
        out_shape=jax.ShapeDtypeStruct((NC, HW), x.dtype),
        grid_spec=pltpu.PrefetchScalarGridSpec(
            num_scalar_prefetch=0,
            grid=grid,
            in_specs=[
                pl.BlockSpec((row_tile, HW), lambda i: (i, 0)),
                # Full-array blocks with a constant index_map: DMA'd once and
                # kept resident in VMEM instead of two tiny sub-lane DMAs per
                # grid step.
                pl.BlockSpec((NC, 1), lambda i: (0, 0)),
                pl.BlockSpec((NC, 1), lambda i: (0, 0)),
            ],
            out_specs=pl.BlockSpec((row_tile, HW), lambda i: (i, 0)),
        ),
        compiler_params=pltpu.CompilerParams(
            dimension_semantics=("parallel",),
            vmem_limit_bytes=vmem_limit,
        ),
    )(x2, g2, b2)
    return out.reshape(N, C, H, W)


def adain2d_ref(x, weight, bias, eps=1e-5):
    N, C, H, W = x.shape
    x2 = x.reshape(N * C, H * W).astype(jnp.float32)
    mean = jnp.mean(x2, axis=-1, keepdims=True)
    var = jnp.mean((x2 - mean) ** 2, axis=-1, keepdims=True)
    y = (x2 - mean) / jnp.sqrt(var + eps)
    y = y * weight.reshape(-1, 1) + bias.reshape(-1, 1)
    return y.reshape(N, C, H, W).astype(x.dtype)


if __name__ == "__main__":
    key = jax.random.PRNGKey(0)
    N, C, H, W = 2, 4, 16, 16
    kx, kw, kb = jax.random.split(key, 3)
    x = jax.random.normal(kx, (N, C, H, W), dtype=jnp.float32)
    # AdaIN style params: assigned externally per (n, c) instance channel
    # (the forward's view(1, N*C, HW) requires (N*C,)-shaped params).
    weight = jax.random.normal(kw, (N * C,), dtype=jnp.float32) * 0.5 + 1.0
    bias = jax.random.normal(kb, (N * C,), dtype=jnp.float32) * 0.1

    out = adain2d(x, weight, bias, eps=1e-5)
    out = jax.block_until_ready(out)

    ref = adain2d_ref(x, weight, bias, eps=1e-5)
    assert out.shape == (N, C, H, W)
    assert jnp.allclose(out, ref, atol=1e-4, rtol=1e-4)
    print("KERNEL_OK")
</pallas_src>

<mosaic_0001>
module attributes {stable_mosaic.version = 11 : i64} {
  func.func @_adain_kernel(%arg0: i32, %arg1: memref<8x256xf32, #tpu.memory_space<vmem>>, %arg2: memref<8x1xf32, #tpu.memory_space<vmem>>, %arg3: memref<8x1xf32, #tpu.memory_space<vmem>>, %arg4: memref<8x256xf32, #tpu.memory_space<vmem>>) attributes {dimension_semantics = [#tpu.dimension_semantics<parallel>], iteration_bounds = array<i64: 1>, scalar_prefetch = 0 : i64, scratch_operands = 0 : i64, tpu.core_type = #tpu.core_type<tc>, window_params = [{transform_indices = @transform_0, window_bounds = array<i64: 8, 256>}, {pipeline_mode = #tpu.pipeline_mode<synchronous>, transform_indices = @transform_1, window_bounds = array<i64: 8, 1>}, {pipeline_mode = #tpu.pipeline_mode<synchronous>, transform_indices = @transform_2, window_bounds = array<i64: 8, 1>}, {transform_indices = @transform_3, window_bounds = array<i64: 8, 256>}]} {
    %c8_i32 = arith.constant 8 : i32
    %0 = arith.muli %arg0, %c8_i32 : i32
    %1 = tpu.assume_multiple %0, 8 : i32
    %2 = arith.index_cast %1 : i32 to index
    %c0 = arith.constant 0 : index
    %3 = vector.load %arg2[%2, %c0] : memref<8x1xf32, #tpu.memory_space<vmem>>, vector<8x1xf32>
    %4 = arith.index_cast %1 : i32 to index
    %c0_0 = arith.constant 0 : index
    %5 = vector.load %arg3[%4, %c0_0] : memref<8x1xf32, #tpu.memory_space<vmem>>, vector<8x1xf32>
    %c0_1 = arith.constant 0 : index
    %c0_2 = arith.constant 0 : index
    %6 = vector.load %arg1[%c0_1, %c0_2] : memref<8x256xf32, #tpu.memory_space<vmem>>, vector<8x256xf32>
    %cst = arith.constant dense<0.000000e+00> : vector<8xf32>
    %7 = vector.multi_reduction <add>, %6, %cst [1] : vector<8x256xf32> to vector<8xf32>
    %8 = vector.shape_cast %7 : vector<8xf32> to vector<8x1xf32>
    %9 = arith.mulf %6, %6 : vector<8x256xf32>
    %cst_3 = arith.constant dense<0.000000e+00> : vector<8xf32>
    %10 = vector.multi_reduction <add>, %9, %cst_3 [1] : vector<8x256xf32> to vector<8xf32>
    %11 = vector.shape_cast %10 : vector<8xf32> to vector<8x1xf32>
    %cst_4 = arith.constant 3.906250e-03 : f32
    %12 = vector.broadcast %cst_4 : f32 to vector<8x1xf32>
    %13 = arith.mulf %8, %12 : vector<8x1xf32>
    %cst_5 = arith.constant 3.906250e-03 : f32
    %14 = vector.broadcast %cst_5 : f32 to vector<8x1xf32>
    %15 = arith.mulf %11, %14 : vector<8x1xf32>
    %16 = arith.mulf %13, %13 : vector<8x1xf32>
    %17 = arith.subf %15, %16 : vector<8x1xf32>
    %cst_6 = arith.constant 0.000000e+00 : f32
    %18 = vector.broadcast %cst_6 : f32 to vector<8x1xf32>
    %19 = arith.maximumf %17, %18 : vector<8x1xf32>
    %cst_7 = arith.constant 9.99999974E-6 : f32
    %20 = vector.broadcast %cst_7 : f32 to vector<8x1xf32>
    %21 = arith.addf %19, %20 : vector<8x1xf32>
    %22 = math.rsqrt %21 : vector<8x1xf32>
    %23 = arith.mulf %22, %3 : vector<8x1xf32>
    %24 = arith.mulf %13, %23 : vector<8x1xf32>
    %25 = arith.subf %5, %24 : vector<8x1xf32>
    %26 = vector.broadcast %23 : vector<8x1xf32> to vector<8x256xf32>
    %27 = arith.mulf %6, %26 : vector<8x256xf32>
    %28 = vector.broadcast %25 : vector<8x1xf32> to vector<8x256xf32>
    %29 = arith.addf %27, %28 : vector<8x256xf32>
    %c0_8 = arith.constant 0 : index
    %c0_9 = arith.constant 0 : index
    %30 = vector.load %arg4[%c0_8, %c0_9] : memref<8x256xf32, #tpu.memory_space<vmem>>, vector<8x256xf32>
    tpu.vector_store %arg4[%c0_8, %c0_9], %29 {strides = array<i32>} : memref<8x256xf32, #tpu.memory_space<vmem>>, vector<8x256xf32>,
    return
  }
  func.func @transform_0(%arg0: i32) -> (i32, i32) {
    %c0_i32 = arith.constant 0 : i32
    %c0_i32_0 = arith.constant 0 : i32
    return %arg0, %c0_i32 : i32, i32
  }
  func.func @transform_1(%arg0: i32) -> (i32, i32) {
    %c0_i32 = arith.constant 0 : i32
    %c0_i32_0 = arith.constant 0 : i32
    %c0_i32_1 = arith.constant 0 : i32
    return %c0_i32, %c0_i32_0 : i32, i32
  }
  func.func @transform_2(%arg0: i32) -> (i32, i32) {
    %c0_i32 = arith.constant 0 : i32
    %c0_i32_0 = arith.constant 0 : i32
    %c0_i32_1 = arith.constant 0 : i32
    return %c0_i32, %c0_i32_0 : i32, i32
  }
  func.func @transform_3(%arg0: i32) -> (i32, i32) {
    %c0_i32 = arith.constant 0 : i32
    %c0_i32_0 = arith.constant 0 : i32
    return %arg0, %c0_i32 : i32, i32
  }
}

</mosaic_0001>

<llo_original>
// kernel: tpu_custom_call.1
$region0: #{tpu_custom_call.1}
  #allocation0 [shape = 'u32[]', space=smem, size = 0x4, offset = 0x4, fixed_abs, tag = 'smem constant byte address 0x4 - core index']
  #allocation1 [shape = 'u32[72,128]{1,0:T(1,128)}', space=vmem, size = 0x9000, scoped, tag = 'internal scratch']
  %s0 = inlined_call_operand.vmem [shape: f32[8,256], index: 0, kind: input, shape index: {}]
  %s1 = inlined_call_operand.vmem [shape: f32[8,1], index: 1, kind: input, shape index: {}]
  %s2 = inlined_call_operand.vmem [shape: f32[8,1], index: 2, kind: input, shape index: {}]
  %s3 = inlined_call_operand.hbm [shape: f32[8,256], index: 3, kind: output, shape index: {}]
  %s4 = sld [smem:[#allocation0]]
  $region22: #{tpu_custom_call.1} parent=0
    _
  %s6 = ssub.s32 1, %s4
  %s7 = scalar_select 0, %s6, %s4
  $region1: #{tpu_custom_call.1} parent=0
    #allocation2 [shape = 'u8[8192]{0}', space=vmem, size = 0x2000, scoped, tag = 'output window, operand 0, single buffered']
    #allocation3 [shape = 's32[1]{0}', space=sflag, size = 0x4, scoped, tag = 'scoped memory for tpu_custom_call.1']
    %8 = vsyncpa [#allocation3], 0
    // Predicated region
    $region2: #{tpu_custom_call.1} parent=1 // pred_check
      _
    $region3: #{tpu_custom_call.1} parent=1 // pred_check_branch
      %10 = sbr.rel (0) target = $region5
    $region4: #{tpu_custom_call.1} parent=1 // pred_region
      _
    $region5: #{tpu_custom_call.1} parent=1 // pred_fallthru
      _
    // Predicated region
    $region6: #{tpu_custom_call.1} parent=1 // pred_check
      _
    $region7: #{tpu_custom_call.1} parent=1 // pred_check_branch
      %12 = sbr.rel (0) target = $region9
    $region8: #{tpu_custom_call.1} parent=1 // pred_region
      _
    $region9: #{tpu_custom_call.1} parent=1 // pred_fallthru
      _
    // Predicated region
    $region10: #{tpu_custom_call.1} parent=1 // pred_check
      _
    $region11: #{tpu_custom_call.1} parent=1 // pred_check_branch
      %14 = sbr.rel (0) target = $region13
    $region12: #{tpu_custom_call.1} parent=1 // pred_region
      _
    $region13: #{tpu_custom_call.1} parent=1 // pred_fallthru
      _
    %s15 = smul.u32 0, 8
    %s16 = scalar_lea.vmem %s1, %s15
    %v17 = vld [vmem:[%s16] sm:$0xff]
    %s18 = scalar_lea.vmem %s2, %s15
    %v19 = vld [vmem:[%s18] sm:$0xff]
    %v20 = vld [vmem:[%s0] sm:$0xff]
    %v21 = vld [vmem:[%s0 + $0x8] sm:$0xff]
    %v22 = vadd.f32 %v20, %v21
    %23 = vadd.xlane.f32.xlu0 %v22
    %v24 = vpop.xlane.xlu0 %23
    %v25 = vmul.f32 %v20, %v20
    %v26 = vmul.f32 %v21, %v21
    %v27 = vadd.f32 %v25, %v26
    %28 = vadd.xlane.f32.xlu0 %v27
    %v29 = vpop.xlane.xlu0 %28
    %v30 = vmul.f32 %v24, 0.00390625
    %v31 = vmul.f32 %v29, 0.00390625
    %v32 = vmul.f32 %v30, %v30
    %v33 = vsub.f32 %v31, %v32
    %v34 = vmax.f32 %v33, 0.0
    %v35 = vadd.f32 %v34, 1e-05
    %v36 = vrsqrt.pop %v35
    %v37 = vmul.f32 %v36, %v35
    %v38 = vmul.f32 %v37, %v36
    %v39 = vmul.f32 0.5, %v38
    %v40 = vsub.f32 1.5, %v39
    %v41 = vmul.f32 %v36, %v40
    %vm42 = vweird.f32 %v35
    %vm43 = vweird.f32 %v36
    %vm44 = vmor %vm42, %vm43
    %v45 = vsel %vm44, %v36, %v41
    %v46 = vmul.f32 %v45, %v17
    %v47 = vmul.f32 %v30, %v46
    %v48 = vsub.f32 %v19, %v47
    %50 = vset.pattern.permute.xlu0 0
    %51 = vperm.xlu0 %50, %v46
    %v52 = vpop.permute.xlu0 %51
    %v54 = vmul.f32 %v20, %v52
    %v55 = vmul.f32 %v21, %v52
    %57 = vset.pattern.permute.xlu0 0
    %58 = vperm.xlu0 %57, %v48
    %v59 = vpop.permute.xlu0 %58
    %v61 = vadd.f32 %v54, %v59
    %v62 = vadd.f32 %v55, %v59
    %63 = vst [vmem:[#allocation2] sm:$0xff] %v61
    %64 = vst [vmem:[#allocation2 + $0x8] sm:$0xff] %v62
    // Predicated region
    $region14: #{tpu_custom_call.1} parent=1 // pred_check
      _
    $region15: #{tpu_custom_call.1} parent=1 // pred_check_branch
      %66 = sbr.rel (0) target = $region17
    $region16: #{tpu_custom_call.1} parent=1 // pred_region
      %68 = vsyncadd [#allocation3], 0
      %s70 = sshll.u32 [#allocation2], 4
      %s71 = int_to_ptr.vmem [resolvable:$true] %s70
      %s72 = sshll.u32 %s3, 4
      %s73 = int_to_ptr.hbm [resolvable:$true] %s72
      %75 = dma.vmem_to_hbm [thread:$0]  %s71, 256, %s73, [#allocation3]
    $region17: #{tpu_custom_call.1} parent=1 // pred_fallthru
      _
    // Predicated region
    $region18: #{tpu_custom_call.1} parent=1 // pred_check
      _
    $region19: #{tpu_custom_call.1} parent=1 // pred_check_branch
      %77 = sbr.rel (0) target = $region21
    $region20: #{tpu_custom_call.1} parent=1 // pred_region
      %79 = dma.done [#allocation3], 256
    $region21: #{tpu_custom_call.1} parent=1 // pred_fallthru
      _
    %80 = vsyncpa [#allocation3], 1

</llo_original>
